<compile_context>
chip_gen: v5e
topology: v5e:2x2
jax: 0.10.0
libtpu: 0.0.40
codegen_flags: <defaults>
</compile_context>

<pallas_src>
import functools

import jax
import jax.numpy as jnp
from jax.experimental import pallas as pl
from jax.experimental.pallas import tpu as pltpu


def _round_up(x, m):
    return (x + m - 1) // m * m


def _pick_tile(dim, align, cap):
    """Largest multiple of `align` that divides `dim` and is <= cap."""
    assert dim % align == 0
    t = max(align, (min(cap, dim) // align) * align)
    while t > align:
        if dim % t == 0:
            return t
        t -= align
    return align


def _linear_kernel(x_ref, w_ref, b_ref, o_ref):
    # x_ref: (tm, tk) f32 activations
    # w_ref: (tk, tn) f32 weight, pre-transposed to (K, N) at init time
    # b_ref: (1, tn)  f32 bias row
    # o_ref: (tm, tn) f32 output tile; resident across the K grid axis, so it
    #        doubles as the accumulator (no scratch, no finalize copy).
    @pl.when(pl.program_id(2) == 0)
    def _init():
        o_ref[...] = jnp.broadcast_to(b_ref[...], o_ref.shape)

    o_ref[...] += jnp.dot(
        x_ref[...], w_ref[...], preferred_element_type=jnp.float32
    )


def _linear_pallas(x_pad, w_kn, b_row, tm, tn, tk):
    Mp, Kp = x_pad.shape
    _, Np = w_kn.shape
    grid = (Mp // tm, Np // tn, Kp // tk)
    grid_m, grid_n, _ = grid

    return pl.pallas_call(
        _linear_kernel,
        out_shape=jax.ShapeDtypeStruct((Mp, Np), jnp.float32),
        grid=grid,
        in_specs=[
            pl.BlockSpec((tm, tk), lambda i, j, k: (i, k)),   # activations
            pl.BlockSpec((tk, tn), lambda i, j, k: (k, j)),   # weight (K, N)
            pl.BlockSpec((1, tn), lambda i, j, k: (0, j)),    # bias row
        ],
        out_specs=pl.BlockSpec((tm, tn), lambda i, j, k: (i, j)),
        compiler_params=pltpu.CompilerParams(
            dimension_semantics=("parallel", "parallel", "arbitrary"),
        ),
        cost_estimate=pl.CostEstimate(
            flops=2 * Mp * Np * Kp,
            transcendentals=0,
            # Account for re-streaming: x is read grid_n times, w grid_m times.
            bytes_accessed=4 * (Mp * Kp * grid_n + Kp * Np * grid_m
                                + Mp * Np + Np),
        ),
    )(x_pad, w_kn, b_row)


@functools.partial(jax.jit, static_argnames=("out_features",))
def pallas_linear_forward(x, w_kn, b_row, out_features):
    """y = x @ W.T + bias with W pre-transposed/padded to w_kn (Kp, Np)."""
    orig_shape = x.shape
    K = orig_shape[-1]
    x2 = x.reshape(-1, K).astype(jnp.float32)
    M = x2.shape[0]

    Kp, Np = w_kn.shape
    Mp = _round_up(max(M, 1), 8)
    # Pad activations only when strictly needed (M to 8, K to the weight's Kp);
    # zero K-padding keeps the contraction exact.
    if (Mp, Kp) != (M, K):
        x2 = jnp.pad(x2, ((0, Mp - M), (0, Kp - K)))

    # Divisor tiles of the minimally-aligned dims: every block is full, output
    # stores are lane-dense unmasked vst, and no FLOPs are wasted on padding.
    tm = _pick_tile(Mp, 8, 512)
    tn = _pick_tile(Np, 128, 512)
    tk = _pick_tile(Kp, 128, 1024)

    out = _linear_pallas(x2, w_kn, b_row, tm, tn, tk)

    if (Mp, Np) != (M, out_features):
        out = out[:M, :out_features]
    return out.reshape(*orig_shape[:-1], out_features)


class PallasLinear:
    """Equivalent of torch.nn.Linear(a, b) with params prepared once at init."""

    def __init__(self, weight, bias):
        weight = jnp.asarray(weight, jnp.float32)   # (N, K) PyTorch layout
        bias = jnp.asarray(bias, jnp.float32)       # (N,)
        self.out_features, self.in_features = weight.shape

        Np = _round_up(self.out_features, 128)
        Kp = _round_up(self.in_features, 128)

        w = weight
        if (Np, Kp) != weight.shape:
            w = jnp.pad(w, ((0, Np - self.out_features),
                            (0, Kp - self.in_features)))
        # One-time layout change off the hot path: (N,K) -> (K,N) so the kernel
        # runs a native MXU matmul with no per-tile XLU transposes.
        self.w_kn = jax.block_until_ready(jnp.asarray(w.T))       # (Kp, Np)

        b = bias if Np == self.out_features else jnp.pad(
            bias, (0, Np - self.out_features))
        self.b_row = jax.block_until_ready(b.reshape(1, Np))      # (1, Np)

    def __call__(self, x):
        return pallas_linear_forward(x, self.w_kn, self.b_row, self.out_features)


if __name__ == "__main__":
    # --- Small shapes consistent with nn.Linear(a, b): batch=4, a=32, b=16 ---
    batch, a, b = 4, 32, 16
    key = jax.random.PRNGKey(0)
    k_x, k_w, k_b = jax.random.split(key, 3)

    bound = 1.0 / jnp.sqrt(jnp.float32(a))
    weight = jax.random.uniform(k_w, (b, a), jnp.float32, -bound, bound)
    bias = jax.random.uniform(k_b, (b,), jnp.float32, -bound, bound)
    x = jax.random.normal(k_x, (batch, a), jnp.float32)

    layer = PallasLinear(weight, bias)
    y = jax.block_until_ready(layer(x))
    y_ref = x @ weight.T + bias
    assert y.shape == (batch, b)
    assert jnp.allclose(y, y_ref, atol=1e-5, rtol=1e-5)

    # --- Aligned larger check: multi-block N grid and K accumulation (grid (1,2,2)) ---
    M2, K2, N2 = 512, 2048, 768
    k_x2, k_w2, k_b2 = jax.random.split(jax.random.PRNGKey(1), 3)
    bound2 = 1.0 / jnp.sqrt(jnp.float32(K2))
    w2 = jax.random.uniform(k_w2, (N2, K2), jnp.float32, -bound2, bound2)
    b2 = jax.random.uniform(k_b2, (N2,), jnp.float32, -bound2, bound2)
    x2 = jax.random.normal(k_x2, (M2, K2), jnp.float32)

    layer2 = PallasLinear(w2, b2)
    y2 = jax.block_until_ready(layer2(x2))
    y2_ref = jnp.dot(x2, w2.T) + b2
    assert y2.shape == (M2, N2)
    assert jnp.allclose(y2, y2_ref, atol=5e-3, rtol=5e-3)

    # --- Non-aligned shapes: exercises minimal 8/128 padding + output slicing ---
    M3, K3, N3 = 320, 1000, 300
    k_x3, k_w3, k_b3 = jax.random.split(jax.random.PRNGKey(2), 3)
    bound3 = 1.0 / jnp.sqrt(jnp.float32(K3))
    w3 = jax.random.uniform(k_w3, (N3, K3), jnp.float32, -bound3, bound3)
    b3 = jax.random.uniform(k_b3, (N3,), jnp.float32, -bound3, bound3)
    x3 = jax.random.normal(k_x3, (M3, K3), jnp.float32)

    layer3 = PallasLinear(w3, b3)
    y3 = jax.block_until_ready(layer3(x3))
    y3_ref = jnp.dot(x3, w3.T) + b3
    assert y3.shape == (M3, N3)
    assert jnp.allclose(y3, y3_ref, atol=5e-3, rtol=5e-3)

    print("KERNEL_OK")
</pallas_src>

<mosaic_0001>
module attributes {stable_mosaic.version = 11 : i64} {
  func.func @_linear_kernel(%arg0: i32, %arg1: i32, %arg2: i32, %arg3: memref<8x128xf32, #tpu.memory_space<vmem>>, %arg4: memref<128x128xf32, #tpu.memory_space<vmem>>, %arg5: memref<1x128xf32, #tpu.memory_space<vmem>>, %arg6: memref<8x128xf32, #tpu.memory_space<vmem>>) attributes {dimension_semantics = [#tpu.dimension_semantics<parallel>, #tpu.dimension_semantics<parallel>, #tpu.dimension_semantics<arbitrary>], iteration_bounds = array<i64: 1, 1, 1>, scalar_prefetch = 0 : i64, scratch_operands = 0 : i64, tpu.core_type = #tpu.core_type<tc>, window_params = [{transform_indices = @transform_0, window_bounds = array<i64: 8, 128>}, {transform_indices = @transform_1, window_bounds = array<i64: 128, 128>}, {transform_indices = @transform_2, window_bounds = array<i64: 1, 128>}, {transform_indices = @transform_3, window_bounds = array<i64: 8, 128>}]} {
    %c0_i32 = arith.constant 0 : i32
    %0 = arith.cmpi eq, %arg2, %c0_i32 : i32
    %1 = arith.extui %0 : i1 to i32
    %c0_i32_0 = arith.constant 0 : i32
    %2 = arith.cmpi ne, %1, %c0_i32_0 : i32
    scf.if %2 {
      %c0_8 = arith.constant 0 : index
      %c0_9 = arith.constant 0 : index
      %9 = vector.load %arg5[%c0_8, %c0_9] : memref<1x128xf32, #tpu.memory_space<vmem>>, vector<1x128xf32>
      %10 = vector.shape_cast %9 : vector<1x128xf32> to vector<1x128xf32>
      %11 = vector.broadcast %10 : vector<1x128xf32> to vector<8x128xf32>
      %c0_10 = arith.constant 0 : index
      %c0_11 = arith.constant 0 : index
      %12 = vector.load %arg6[%c0_10, %c0_11] : memref<8x128xf32, #tpu.memory_space<vmem>>, vector<8x128xf32>
      tpu.vector_store %arg6[%c0_10, %c0_11], %11 {strides = array<i32>} : memref<8x128xf32, #tpu.memory_space<vmem>>, vector<8x128xf32>,
    } else {
    }
    %c0 = arith.constant 0 : index
    %c0_1 = arith.constant 0 : index
    %3 = vector.load %arg6[%c0, %c0_1] : memref<8x128xf32, #tpu.memory_space<vmem>>, vector<8x128xf32>
    %c0_2 = arith.constant 0 : index
    %c0_3 = arith.constant 0 : index
    %4 = vector.load %arg3[%c0_2, %c0_3] : memref<8x128xf32, #tpu.memory_space<vmem>>, vector<8x128xf32>
    %c0_4 = arith.constant 0 : index
    %c0_5 = arith.constant 0 : index
    %5 = vector.load %arg4[%c0_4, %c0_5] : memref<128x128xf32, #tpu.memory_space<vmem>>, vector<128x128xf32>
    %cst = arith.constant dense<0.000000e+00> : vector<8x128xf32>
    %6 = tpu.matmul %4, %5, %cst {dimension_numbers = #tpu.dot_dimension_numbers<[1], [0], [0], [1], [0, 0, 1, 1], [], []>} : vector<8x128xf32>, vector<128x128xf32>, vector<8x128xf32> -> vector<8x128xf32>
    %7 = arith.addf %3, %6 : vector<8x128xf32>
    %c0_6 = arith.constant 0 : index
    %c0_7 = arith.constant 0 : index
    %8 = vector.load %arg6[%c0_6, %c0_7] : memref<8x128xf32, #tpu.memory_space<vmem>>, vector<8x128xf32>
    tpu.vector_store %arg6[%c0_6, %c0_7], %7 {strides = array<i32>} : memref<8x128xf32, #tpu.memory_space<vmem>>, vector<8x128xf32>,
    return
  }
  func.func @transform_0(%arg0: i32, %arg1: i32, %arg2: i32) -> (i32, i32) {
    %c0_i32 = arith.constant 0 : i32
    return %arg0, %arg2 : i32, i32
  }
  func.func @transform_1(%arg0: i32, %arg1: i32, %arg2: i32) -> (i32, i32) {
    %c0_i32 = arith.constant 0 : i32
    return %arg2, %arg1 : i32, i32
  }
  func.func @transform_2(%arg0: i32, %arg1: i32, %arg2: i32) -> (i32, i32) {
    %c0_i32 = arith.constant 0 : i32
    %c0_i32_0 = arith.constant 0 : i32
    return %c0_i32, %arg1 : i32, i32
  }
  func.func @transform_3(%arg0: i32, %arg1: i32, %arg2: i32) -> (i32, i32) {
    %c0_i32 = arith.constant 0 : i32
    return %arg0, %arg1 : i32, i32
  }
}

</mosaic_0001>

<llo_original>
// kernel: pallas_linear_forward.1
$region0: #{pallas_linear_forward.1}
  #allocation0 [shape = 'u32[]', space=smem, size = 0x4, offset = 0x4, fixed_abs, tag = 'smem constant byte address 0x4 - core index']
  #allocation1 [shape = 'u32[72,128]{1,0:T(1,128)}', space=vmem, size = 0x9000, scoped, tag = 'internal scratch']
  %s0 = inlined_call_operand.vmem [shape: f32[8,128], index: 0, kind: input, shape index: {}]
  %s1 = inlined_call_operand.hbm [shape: f32[128,128], index: 1, kind: input, shape index: {}]
  %s2 = inlined_call_operand.vmem [shape: f32[1,128], index: 2, kind: input, shape index: {}]
  %s3 = inlined_call_operand.vmem [shape: f32[8,128], index: 3, kind: output, shape index: {}]
  %s4 = sld [smem:[#allocation0]]
  $region30: #{pallas_linear_forward.1} parent=0
    _
  %s6 = ssub.s32 1, %s4
  %s7 = scalar_select 0, %s6, %s4
  $region1: #{pallas_linear_forward.1} parent=0
    #allocation2 [shape = 'u8[65536]{0}', space=vmem, size = 0x10000, scoped, tag = 'input window, operand 1, single buffered']
    #allocation3 [shape = 's32[1]{0}', space=sflag, size = 0x4, scoped, tag = 'scoped memory for pallas_linear_forward.1']
    %8 = vsyncpa [#allocation3], 0
    // Predicated region
    $region2: #{pallas_linear_forward.1} parent=1 // pred_check
      _
    $region3: #{pallas_linear_forward.1} parent=1 // pred_check_branch
      %10 = sbr.rel (0) target = $region5
    $region4: #{pallas_linear_forward.1} parent=1 // pred_region
      _
    $region5: #{pallas_linear_forward.1} parent=1 // pred_fallthru
      _
    // Predicated region
    $region6: #{pallas_linear_forward.1} parent=1 // pred_check
      _
    $region7: #{pallas_linear_forward.1} parent=1 // pred_check_branch
      %12 = sbr.rel (0) target = $region9
    $region8: #{pallas_linear_forward.1} parent=1 // pred_region
      %14 = vsyncadd [#allocation3], 0
      %s15 = sshll.u32 %s1, 4
      %s16 = int_to_ptr.hbm [resolvable:$true] %s15
      %s17 = sshll.u32 [#allocation2], 4
      %s18 = int_to_ptr.vmem [resolvable:$true] %s17
      %23 = dma.hbm_to_vmem [thread:$0]  %s16, 2048, %s18, [#allocation3], 128, 128, 8
    $region9: #{pallas_linear_forward.1} parent=1 // pred_fallthru
      _
    // Predicated region
    $region10: #{pallas_linear_forward.1} parent=1 // pred_check
      _
    $region11: #{pallas_linear_forward.1} parent=1 // pred_check_branch
      %25 = sbr.rel (0) target = $region13
    $region12: #{pallas_linear_forward.1} parent=1 // pred_region
      _
    $region13: #{pallas_linear_forward.1} parent=1 // pred_fallthru
      _
    // Predicated region
    $region14: #{pallas_linear_forward.1} parent=1 // pred_check
      _
    $region15: #{pallas_linear_forward.1} parent=1 // pred_check_branch
      %27 = sbr.rel (0) target = $region17
    $region16: #{pallas_linear_forward.1} parent=1 // pred_region
      %29 = dma.done [#allocation3], 2048
    $region17: #{pallas_linear_forward.1} parent=1 // pred_fallthru
      _
    %p30 = scmp.eq.s32.totalorder 0, 0
    // Predicated region
    $region18: #{pallas_linear_forward.1} parent=1 // pred_check
      %p31 = pneg %p30
    $region19: #{pallas_linear_forward.1} parent=1 // pred_check_branch
      %33 = sbr.rel (%p31) target = $region21
    $region20: #{pallas_linear_forward.1} parent=1 // pred_region
      %v34 = vld [vmem:[%s2] sm:$0x1]
      %v36 = vperm.slane %v34, 0
      %38 = vst [vmem:[%s3] sm:$0xff] %v36
    $region21: #{pallas_linear_forward.1} parent=1 // pred_fallthru
      _
    %v39 = vld [vmem:[%s3] sm:$0xff]
    %v40 = vld [vmem:[%s0] sm:$0xff]
    %v41 = vld [vmem:[#allocation2] sm:$0xff]
    %v42 = vld [vmem:[#allocation2 + $0x8] sm:$0xff]
    %v43 = vld [vmem:[#allocation2 + $0x10] sm:$0xff]
    %v44 = vld [vmem:[#allocation2 + $0x18] sm:$0xff]
    %v45 = vld [vmem:[#allocation2 + $0x20] sm:$0xff]
    %v46 = vld [vmem:[#allocation2 + $0x28] sm:$0xff]
    %v47 = vld [vmem:[#allocation2 + $0x30] sm:$0xff]
    %v48 = vld [vmem:[#allocation2 + $0x38] sm:$0xff]
    %v49 = vld [vmem:[#allocation2 + $0x40] sm:$0xff]
    %v50 = vld [vmem:[#allocation2 + $0x48] sm:$0xff]
    %v51 = vld [vmem:[#allocation2 + $0x50] sm:$0xff]
    %v52 = vld [vmem:[#allocation2 + $0x58] sm:$0xff]
    %v53 = vld [vmem:[#allocation2 + $0x60] sm:$0xff]
    %v54 = vld [vmem:[#allocation2 + $0x68] sm:$0xff]
    %v55 = vld [vmem:[#allocation2 + $0x70] sm:$0xff]
    %v56 = vld [vmem:[#allocation2 + $0x78] sm:$0xff]
    %57 = vmatpush.msra.mxu0 %v56
    %58 = vmatpush.msra.mxu0 %v55
    %59 = vmatpush.msra.mxu0 %v54
    %60 = vmatpush.msra.mxu0 %v53
    %61 = vmatpush.msra.mxu0 %v52
    %62 = vmatpush.msra.mxu0 %v51
    %63 = vmatpush.msra.mxu0 %v50
    %64 = vmatpush.msra.mxu0 %v49
    %65 = vmatpush.msra.mxu0 %v48
    %66 = vmatpush.msra.mxu0 %v47
    %67 = vmatpush.msra.mxu0 %v46
    %68 = vmatpush.msra.mxu0 %v45
    %69 = vmatpush.msra.mxu0 %v44
    %70 = vmatpush.msra.mxu0 %v43
    %71 = vmatpush.msra.mxu0 %v42
    %72 = vmatpush.msra.mxu0 %v41
    %73 = vmatmul.f32.gmra.mxu0 %v40
    %v74 = vpop.f32.mrf.mxu0
    %v75 = vadd.f32 0.0, %v74
    %76 = vdwg.mxu0
    %v77 = vadd.f32 %v39, %v75
    %78 = vst [vmem:[%s3] sm:$0xff] %v77
    // Predicated region
    $region22: #{pallas_linear_forward.1} parent=1 // pred_check
      _
    $region23: #{pallas_linear_forward.1} parent=1 // pred_check_branch
      %80 = sbr.rel (0) target = $region25
    $region24: #{pallas_linear_forward.1} parent=1 // pred_region
      _
    $region25: #{pallas_linear_forward.1} parent=1 // pred_fallthru
      _
    // Predicated region
    $region26: #{pallas_linear_forward.1} parent=1 // pred_check
      _
    $region27: #{pallas_linear_forward.1} parent=1 // pred_check_branch
      %82 = sbr.rel (0) target = $region29
    $region28: #{pallas_linear_forward.1} parent=1 // pred_region
      _
    $region29: #{pallas_linear_forward.1} parent=1 // pred_fallthru
      _
    %83 = vsyncpa [#allocation3], 1

</llo_original>
